<compile_context>
chip_gen: v6e
topology: v6e:2x2x1
jax: 0.10.0
libtpu: 0.0.40
codegen_flags: <defaults>
</compile_context>

<pallas_src>
import functools

import jax
import jax.numpy as jnp
from jax.experimental import pallas as pl
from jax.experimental.pallas import tpu as pltpu


def _cdiv(a: int, b: int) -> int:
    return (a + b - 1) // b


def _round_up(a: int, b: int) -> int:
    return _cdiv(a, b) * b


def _hw_params():
    """(num_cores, vmem_budget_bytes, vmem_limit_bytes) — generation aware."""
    phys = 128 * 1024 * 1024
    try:
        phys = int(pltpu.get_tpu_info().vmem_capacity_bytes)
    except Exception:
        pass
    if phys <= 64 * 1024 * 1024:
        # v7x: 64 MiB VMEM per TensorCore, 2 TensorCores per chip -> split batch.
        num_cores, budget, limit = 2, 24 * 1024 * 1024, 32 * 1024 * 1024
    else:
        # v5e / v6e: 128 MiB VMEM, single TensorCore -> bigger blocks, no split.
        num_cores, budget, limit = 1, 48 * 1024 * 1024, 64 * 1024 * 1024
    limit = min(limit, phys // 2)        # never request more than half of physical VMEM
    budget = min(budget, limit * 3 // 4)  # leave headroom for compiler scratch
    return num_cores, budget, limit


def _choose_tiles(n_rows: int, n_cols: int, itemsize: int, row_mult: int,
                  max_block_bytes: int):
    """Pick (tile_n, tile_c) targeting ~max_block_bytes per input block."""
    if row_mult * n_cols * itemsize <= max_block_bytes:
        # Whole class axis fits one block: single class tile, maximize rows.
        tile_c = n_cols
        tile_n = max_block_bytes // (n_cols * itemsize)
        tile_n = max(row_mult, (tile_n // row_mult) * row_mult)
        tile_n = min(tile_n, _round_up(n_rows, row_mult))
    else:
        # Vocab-sized C: split the class axis (online logsumexp in the kernel).
        tile_n = row_mult
        tile_c = max_block_bytes // (row_mult * itemsize)
        tile_c = max(128, (tile_c // 128) * 128)
        tile_c = min(tile_c, _round_up(n_cols, 128))
    return tile_n, tile_c


def _stce_kernel(x_ref, t_ref, out_ref,
                 m_acc, s_acc, tsum_acc, txsum_acc, ce_acc, *,
                 total_rows: int, num_classes: int, tile_n: int, tile_c: int,
                 tiles_per_core: int, mask_classes: bool):
    c = pl.program_id(0)      # TensorCore / batch-shard axis ("parallel")
    i = pl.program_id(1)      # row-tile axis within the shard ("arbitrary")
    j = pl.program_id(2)      # class-tile axis ("arbitrary", online logsumexp)
    nj = pl.num_programs(2)

    @pl.when(jnp.logical_and(i == 0, j == 0))
    def _():
        ce_acc[...] = jnp.zeros_like(ce_acc)

    @pl.when(j == 0)
    def _():
        m_acc[...] = jnp.full_like(m_acc, -jnp.inf)
        s_acc[...] = jnp.zeros_like(s_acc)
        tsum_acc[...] = jnp.zeros_like(tsum_acc)
        txsum_acc[...] = jnp.zeros_like(txsum_acc)

    # TODO(synk): for bf16 inputs avoid the full-tile f32 copies (exact max in
    # native dtype, mixed-precision multiply with f32 accumulation); the tile
    # sizing already budgets VMEM for these f32 temporaries.
    x = x_ref[...].astype(jnp.float32)      # (tile_n, tile_c)
    t = t_ref[...].astype(jnp.float32)      # (tile_n, tile_c)

    if mask_classes:
        # Ragged last class tile: SELECT (never multiply) so garbage lanes past
        # C can never leak NaN/inf into the accumulators.
        lane = j * tile_c + jax.lax.broadcasted_iota(jnp.int32, (tile_n, tile_c), 1)
        valid = lane < num_classes
        tx = jnp.where(valid, t * x, 0.0)
        t = jnp.where(valid, t, 0.0)
        x = jnp.where(valid, x, -jnp.inf)
    else:
        tx = t * x

    # Online (streaming) logsumexp along the class axis.
    m_old = m_acc[...]
    m_new = jnp.maximum(m_old, jnp.max(x, axis=-1, keepdims=True))      # (tile_n, 1)
    s_acc[...] = (s_acc[...] * jnp.exp(m_old - m_new)
                  + jnp.sum(jnp.exp(x - m_new), axis=-1, keepdims=True))
    m_acc[...] = m_new
    # Folded per-row loss:  sum(-t * log_softmax(x)) = lse*sum(t) - sum(t*x).
    tsum_acc[...] += jnp.sum(t, axis=-1, keepdims=True)
    txsum_acc[...] += jnp.sum(tx, axis=-1, keepdims=True)

    @pl.when(j == nj - 1)
    def _():
        lse = m_acc[...] + jnp.log(s_acc[...])
        per_row = lse * tsum_acc[...] - txsum_acc[...]
        # Mask rows past the true batch (ragged last row tile and clamped padded
        # (c, i) steps). Keep this a SELECT: garbage rows may carry NaN/inf.
        row0 = (c * tiles_per_core + i) * tile_n
        rows = row0 + jax.lax.broadcasted_iota(jnp.int32, (tile_n, 1), 0)
        ce_acc[...] += jnp.where(rows < total_rows, per_row, 0.0)

    @pl.when(jnp.logical_and(i == pl.num_programs(1) - 1, j == nj - 1))
    def _():
        # Single cross-sublane reduce per core, epilogue only. Partial sum out.
        out_ref[...] = jnp.sum(ce_acc[...], axis=0, keepdims=True)


def soft_target_cross_entropy(x: jax.Array, target: jax.Array, *,
                              num_cores: int | None = None,
                              max_block_bytes: int | None = None) -> jax.Array:
    """x, target: [N, C]. Returns scalar float32 loss (mean over batch)."""
    assert x.shape == target.shape and x.ndim == 2
    N, C = x.shape

    itemsize = jnp.dtype(x.dtype).itemsize
    row_mult = 16 if itemsize == 2 else 8           # respect bf16 (16,128) min tile

    hw_cores, vmem_budget, vmem_limit = _hw_params()
    if num_cores is None:
        num_cores = hw_cores
    if max_block_bytes is None:
        # Live VMEM/step ~= 2 inputs * 2 buffers * B  +  ~4 f32 full-tile temps
        # (= 16/itemsize * B); also cap at 4 MiB (HBM roofline by ~2-4 MiB blocks).
        max_block_bytes = min(vmem_budget // (4 + 16 // itemsize), 4 * 1024 * 1024)
    max_block_bytes = max(max_block_bytes, row_mult * 128 * itemsize)

    tile_n, tile_c = _choose_tiles(N, C, itemsize, row_mult, max_block_bytes)

    num_row_tiles = _cdiv(N, tile_n)
    if num_row_tiles < num_cores:                   # not enough tiles to split
        num_cores = 1
    tiles_per_core = _cdiv(num_row_tiles, num_cores)
    num_class_tiles = _cdiv(C, tile_c)
    mask_classes = (num_class_tiles * tile_c != C)

    kernel = functools.partial(
        _stce_kernel, total_rows=N, num_classes=C, tile_n=tile_n, tile_c=tile_c,
        tiles_per_core=tiles_per_core, mask_classes=mask_classes)

    def in_map(c, i, j):
        # Clamp so padded (c, i) steps never request a fully out-of-range row
        # block; their rows are masked to zero inside the kernel.
        return (jnp.minimum(c * tiles_per_core + i, num_row_tiles - 1), j)

    # TODO(synk): for C < 128 a lane-dense row-packing layout (or a plain-XLA
    # fallback) would recover the unused lanes; kept on the kernel path here.
    partials = pl.pallas_call(
        kernel,
        out_shape=jax.ShapeDtypeStruct((num_cores, 1), jnp.float32),
        grid_spec=pltpu.PrefetchScalarGridSpec(
            num_scalar_prefetch=0,
            grid=(num_cores, tiles_per_core, num_class_tiles),
            in_specs=[
                pl.BlockSpec((tile_n, tile_c), in_map),
                pl.BlockSpec((tile_n, tile_c), in_map),
            ],
            out_specs=pl.BlockSpec((1, 1), lambda c, i, j: (c, 0)),
            scratch_shapes=[pltpu.VMEM((tile_n, 1), jnp.float32)] * 5,
        ),
        compiler_params=pltpu.CompilerParams(
            dimension_semantics=("parallel", "arbitrary", "arbitrary"),
            vmem_limit_bytes=vmem_limit,
        ),
    )(x, target)

    # Sum per-core partials, then divide by the true batch size.
    return jnp.sum(partials) / jnp.float32(N)


def _reference(x, target):
    logp = jax.nn.log_softmax(x.astype(jnp.float32), axis=-1)
    return jnp.mean(jnp.sum(-target.astype(jnp.float32) * logp, axis=-1))


if __name__ == "__main__":
    key = jax.random.PRNGKey(0)
    kx, kt, kx2, kt2 = jax.random.split(key, 4)

    # 1) Small shape (batch=16, num_classes=32): single class tile, large row tile.
    N, C = 16, 32
    x = jax.random.normal(kx, (N, C), dtype=jnp.float32)
    target = jax.nn.softmax(jax.random.normal(kt, (N, C), dtype=jnp.float32), axis=-1)
    loss = jax.block_until_ready(soft_target_cross_entropy(x, target))
    ref = _reference(x, target)
    assert jnp.allclose(loss, ref, atol=1e-4, rtol=1e-5), (loss, ref)

    # 2) Force the class-tiled online-logsumexp path at a small shape (ragged rows,
    #    ragged class tile, padded core-split steps) to exercise every mask.
    N2, C2 = 20, 384
    x2 = jax.random.normal(kx2, (N2, C2), dtype=jnp.float32)
    target2 = jax.nn.softmax(jax.random.normal(kt2, (N2, C2), dtype=jnp.float32), axis=-1)
    loss2 = jax.block_until_ready(
        soft_target_cross_entropy(x2, target2, num_cores=2, max_block_bytes=8 * 1024))
    ref2 = _reference(x2, target2)
    assert jnp.allclose(loss2, ref2, atol=1e-4, rtol=1e-5), (loss2, ref2)

    print("KERNEL_OK")
</pallas_src>

<mosaic_0001>
module attributes {stable_mosaic.version = 11 : i64} {
  func.func @_stce_kernel(%arg0: i32, %arg1: i32, %arg2: i32, %arg3: memref<16x32xf32, #tpu.memory_space<vmem>>, %arg4: memref<16x32xf32, #tpu.memory_space<vmem>>, %arg5: memref<1x1xf32, #tpu.memory_space<vmem>>, %arg6: memref<16x1xf32, #tpu.memory_space<vmem>>, %arg7: memref<16x1xf32, #tpu.memory_space<vmem>>, %arg8: memref<16x1xf32, #tpu.memory_space<vmem>>, %arg9: memref<16x1xf32, #tpu.memory_space<vmem>>, %arg10: memref<16x1xf32, #tpu.memory_space<vmem>>) attributes {dimension_semantics = [#tpu.dimension_semantics<parallel>, #tpu.dimension_semantics<arbitrary>, #tpu.dimension_semantics<arbitrary>], iteration_bounds = array<i64: 1, 1, 1>, scalar_prefetch = 0 : i64, scratch_operands = 5 : i64, tpu.core_type = #tpu.core_type<tc>, window_params = [{transform_indices = @transform_0, window_bounds = array<i64: 16, 32>}, {transform_indices = @transform_1, window_bounds = array<i64: 16, 32>}, {transform_indices = @transform_2, window_bounds = array<i64: 1, 1>}]} {
    %c0_i32 = arith.constant 0 : i32
    %0 = arith.cmpi eq, %arg1, %c0_i32 : i32
    %c0_i32_0 = arith.constant 0 : i32
    %1 = arith.cmpi eq, %arg2, %c0_i32_0 : i32
    %2 = arith.andi %0, %1 : i1
    %3 = arith.extui %2 : i1 to i32
    %c0_i32_1 = arith.constant 0 : i32
    %4 = arith.cmpi ne, %3, %c0_i32_1 : i32
    scf.if %4 {
      %cst_31 = arith.constant 0.000000e+00 : f32
      %45 = vector.broadcast %cst_31 : f32 to vector<16x1xf32>
      %c0_32 = arith.constant 0 : index
      %c0_33 = arith.constant 0 : index
      %46 = vector.load %arg10[%c0_32, %c0_33] : memref<16x1xf32, #tpu.memory_space<vmem>>, vector<16x1xf32>
      tpu.vector_store %arg10[%c0_32, %c0_33], %45 {strides = array<i32>} : memref<16x1xf32, #tpu.memory_space<vmem>>, vector<16x1xf32>,
    } else {
    }
    %c0_i32_2 = arith.constant 0 : i32
    %5 = arith.cmpi eq, %arg2, %c0_i32_2 : i32
    %6 = arith.extui %5 : i1 to i32
    %c0_i32_3 = arith.constant 0 : i32
    %7 = arith.cmpi ne, %6, %c0_i32_3 : i32
    scf.if %7 {
      %cst_31 = arith.constant 0xFF800000 : f32
      %45 = vector.broadcast %cst_31 : f32 to vector<16x1xf32>
      %c0_32 = arith.constant 0 : index
      %c0_33 = arith.constant 0 : index
      %46 = vector.load %arg6[%c0_32, %c0_33] : memref<16x1xf32, #tpu.memory_space<vmem>>, vector<16x1xf32>
      tpu.vector_store %arg6[%c0_32, %c0_33], %45 {strides = array<i32>} : memref<16x1xf32, #tpu.memory_space<vmem>>, vector<16x1xf32>,
      %cst_34 = arith.constant 0.000000e+00 : f32
      %47 = vector.broadcast %cst_34 : f32 to vector<16x1xf32>
      %c0_35 = arith.constant 0 : index
      %c0_36 = arith.constant 0 : index
      %48 = vector.load %arg7[%c0_35, %c0_36] : memref<16x1xf32, #tpu.memory_space<vmem>>, vector<16x1xf32>
      tpu.vector_store %arg7[%c0_35, %c0_36], %47 {strides = array<i32>} : memref<16x1xf32, #tpu.memory_space<vmem>>, vector<16x1xf32>,
      %cst_37 = arith.constant 0.000000e+00 : f32
      %49 = vector.broadcast %cst_37 : f32 to vector<16x1xf32>
      %c0_38 = arith.constant 0 : index
      %c0_39 = arith.constant 0 : index
      %50 = vector.load %arg8[%c0_38, %c0_39] : memref<16x1xf32, #tpu.memory_space<vmem>>, vector<16x1xf32>
      tpu.vector_store %arg8[%c0_38, %c0_39], %49 {strides = array<i32>} : memref<16x1xf32, #tpu.memory_space<vmem>>, vector<16x1xf32>,
      %cst_40 = arith.constant 0.000000e+00 : f32
      %51 = vector.broadcast %cst_40 : f32 to vector<16x1xf32>
      %c0_41 = arith.constant 0 : index
      %c0_42 = arith.constant 0 : index
      %52 = vector.load %arg9[%c0_41, %c0_42] : memref<16x1xf32, #tpu.memory_space<vmem>>, vector<16x1xf32>
      tpu.vector_store %arg9[%c0_41, %c0_42], %51 {strides = array<i32>} : memref<16x1xf32, #tpu.memory_space<vmem>>, vector<16x1xf32>,
    } else {
    }
    %c0 = arith.constant 0 : index
    %c0_4 = arith.constant 0 : index
    %8 = vector.load %arg3[%c0, %c0_4] : memref<16x32xf32, #tpu.memory_space<vmem>>, vector<16x32xf32>
    %c0_5 = arith.constant 0 : index
    %c0_6 = arith.constant 0 : index
    %9 = vector.load %arg4[%c0_5, %c0_6] : memref<16x32xf32, #tpu.memory_space<vmem>>, vector<16x32xf32>
    %10 = arith.mulf %9, %8 : vector<16x32xf32>
    %c0_7 = arith.constant 0 : index
    %c0_8 = arith.constant 0 : index
    %11 = vector.load %arg6[%c0_7, %c0_8] : memref<16x1xf32, #tpu.memory_space<vmem>>, vector<16x1xf32>
    %cst = arith.constant dense<0xFF800000> : vector<16xf32>
    %12 = vector.multi_reduction <maximumf>, %8, %cst [1] : vector<16x32xf32> to vector<16xf32>
    %13 = vector.shape_cast %12 : vector<16xf32> to vector<16x1xf32>
    %14 = arith.maximumf %11, %13 : vector<16x1xf32>
    %c0_9 = arith.constant 0 : index
    %c0_10 = arith.constant 0 : index
    %15 = vector.load %arg7[%c0_9, %c0_10] : memref<16x1xf32, #tpu.memory_space<vmem>>, vector<16x1xf32>
    %16 = arith.subf %11, %14 : vector<16x1xf32>
    %17 = math.exp %16 : vector<16x1xf32>
    %18 = arith.mulf %15, %17 : vector<16x1xf32>
    %19 = vector.broadcast %14 : vector<16x1xf32> to vector<16x32xf32>
    %20 = arith.subf %8, %19 : vector<16x32xf32>
    %21 = math.exp %20 : vector<16x32xf32>
    %cst_11 = arith.constant dense<0.000000e+00> : vector<16xf32>
    %22 = vector.multi_reduction <add>, %21, %cst_11 [1] : vector<16x32xf32> to vector<16xf32>
    %23 = vector.shape_cast %22 : vector<16xf32> to vector<16x1xf32>
    %24 = arith.addf %18, %23 : vector<16x1xf32>
    %c0_12 = arith.constant 0 : index
    %c0_13 = arith.constant 0 : index
    %25 = vector.load %arg7[%c0_12, %c0_13] : memref<16x1xf32, #tpu.memory_space<vmem>>, vector<16x1xf32>
    tpu.vector_store %arg7[%c0_12, %c0_13], %24 {strides = array<i32>} : memref<16x1xf32, #tpu.memory_space<vmem>>, vector<16x1xf32>,
    %c0_14 = arith.constant 0 : index
    %c0_15 = arith.constant 0 : index
    %26 = vector.load %arg6[%c0_14, %c0_15] : memref<16x1xf32, #tpu.memory_space<vmem>>, vector<16x1xf32>
    tpu.vector_store %arg6[%c0_14, %c0_15], %14 {strides = array<i32>} : memref<16x1xf32, #tpu.memory_space<vmem>>, vector<16x1xf32>,
    %c0_16 = arith.constant 0 : index
    %c0_17 = arith.constant 0 : index
    %27 = vector.load %arg8[%c0_16, %c0_17] : memref<16x1xf32, #tpu.memory_space<vmem>>, vector<16x1xf32>
    %cst_18 = arith.constant dense<0.000000e+00> : vector<16xf32>
    %28 = vector.multi_reduction <add>, %9, %cst_18 [1] : vector<16x32xf32> to vector<16xf32>
    %29 = vector.shape_cast %28 : vector<16xf32> to vector<16x1xf32>
    %30 = arith.addf %27, %29 : vector<16x1xf32>
    %c0_19 = arith.constant 0 : index
    %c0_20 = arith.constant 0 : index
    %31 = vector.load %arg8[%c0_19, %c0_20] : memref<16x1xf32, #tpu.memory_space<vmem>>, vector<16x1xf32>
    tpu.vector_store %arg8[%c0_19, %c0_20], %30 {strides = array<i32>} : memref<16x1xf32, #tpu.memory_space<vmem>>, vector<16x1xf32>,
    %c0_21 = arith.constant 0 : index
    %c0_22 = arith.constant 0 : index
    %32 = vector.load %arg9[%c0_21, %c0_22] : memref<16x1xf32, #tpu.memory_space<vmem>>, vector<16x1xf32>
    %cst_23 = arith.constant dense<0.000000e+00> : vector<16xf32>
    %33 = vector.multi_reduction <add>, %10, %cst_23 [1] : vector<16x32xf32> to vector<16xf32>
    %34 = vector.shape_cast %33 : vector<16xf32> to vector<16x1xf32>
    %35 = arith.addf %32, %34 : vector<16x1xf32>
    %c0_24 = arith.constant 0 : index
    %c0_25 = arith.constant 0 : index
    %36 = vector.load %arg9[%c0_24, %c0_25] : memref<16x1xf32, #tpu.memory_space<vmem>>, vector<16x1xf32>
    tpu.vector_store %arg9[%c0_24, %c0_25], %35 {strides = array<i32>} : memref<16x1xf32, #tpu.memory_space<vmem>>, vector<16x1xf32>,
    %c0_i32_26 = arith.constant 0 : i32
    %37 = arith.cmpi eq, %arg2, %c0_i32_26 : i32
    %38 = arith.extui %37 : i1 to i32
    %c0_i32_27 = arith.constant 0 : i32
    %39 = arith.cmpi ne, %38, %c0_i32_27 : i32
    scf.if %39 {
      %c0_31 = arith.constant 0 : index
      %c0_32 = arith.constant 0 : index
      %45 = vector.load %arg6[%c0_31, %c0_32] : memref<16x1xf32, #tpu.memory_space<vmem>>, vector<16x1xf32>
      %c0_33 = arith.constant 0 : index
      %c0_34 = arith.constant 0 : index
      %46 = vector.load %arg7[%c0_33, %c0_34] : memref<16x1xf32, #tpu.memory_space<vmem>>, vector<16x1xf32>
      %47 = math.log %46 : vector<16x1xf32>
      %48 = arith.addf %45, %47 : vector<16x1xf32>
      %c0_35 = arith.constant 0 : index
      %c0_36 = arith.constant 0 : index
      %49 = vector.load %arg8[%c0_35, %c0_36] : memref<16x1xf32, #tpu.memory_space<vmem>>, vector<16x1xf32>
      %50 = arith.mulf %48, %49 : vector<16x1xf32>
      %c0_37 = arith.constant 0 : index
      %c0_38 = arith.constant 0 : index
      %51 = vector.load %arg9[%c0_37, %c0_38] : memref<16x1xf32, #tpu.memory_space<vmem>>, vector<16x1xf32>
      %52 = arith.subf %50, %51 : vector<16x1xf32>
      %c1_i32 = arith.constant 1 : i32
      %53 = arith.muli %arg0, %c1_i32 : i32
      %54 = arith.addi %53, %arg1 : i32
      %c16_i32 = arith.constant 16 : i32
      %55 = arith.muli %54, %c16_i32 : i32
      %56 = tpu.iota {dimensions = array<i32: 0>} : vector<16x1xi32>
      %57 = vector.broadcast %55 : i32 to vector<16x1xi32>
      %58 = arith.addi %57, %56 : vector<16x1xi32>
      %c0_39 = arith.constant 0 : index
      %c0_40 = arith.constant 0 : index
      %59 = vector.load %arg10[%c0_39, %c0_40] : memref<16x1xf32, #tpu.memory_space<vmem>>, vector<16x1xf32>
      %c16_i32_41 = arith.constant 16 : i32
      %60 = vector.broadcast %c16_i32_41 : i32 to vector<16x1xi32>
      %61 = arith.cmpi slt, %58, %60 : vector<16x1xi32>
      %cst_42 = arith.constant 0.000000e+00 : f32
      %62 = vector.broadcast %cst_42 : f32 to vector<16x1xf32>
      %63 = arith.select %61, %52, %62 : vector<16x1xi1>, vector<16x1xf32>
      %64 = arith.addf %59, %63 : vector<16x1xf32>
      %c0_43 = arith.constant 0 : index
      %c0_44 = arith.constant 0 : index
      %65 = vector.load %arg10[%c0_43, %c0_44] : memref<16x1xf32, #tpu.memory_space<vmem>>, vector<16x1xf32>
      tpu.vector_store %arg10[%c0_43, %c0_44], %64 {strides = array<i32>} : memref<16x1xf32, #tpu.memory_space<vmem>>, vector<16x1xf32>,
    } else {
    }
    %c0_i32_28 = arith.constant 0 : i32
    %40 = arith.cmpi eq, %arg1, %c0_i32_28 : i32
    %c0_i32_29 = arith.constant 0 : i32
    %41 = arith.cmpi eq, %arg2, %c0_i32_29 : i32
    %42 = arith.andi %40, %41 : i1
    %43 = arith.extui %42 : i1 to i32
    %c0_i32_30 = arith.constant 0 : i32
    %44 = arith.cmpi ne, %43, %c0_i32_30 : i32
    scf.if %44 {
      %c0_31 = arith.constant 0 : index
      %c0_32 = arith.constant 0 : index
      %45 = vector.load %arg10[%c0_31, %c0_32] : memref<16x1xf32, #tpu.memory_space<vmem>>, vector<16x1xf32>
      %cst_33 = arith.constant dense<0.000000e+00> : vector<1xf32>
      %46 = vector.multi_reduction <add>, %45, %cst_33 [0] : vector<16x1xf32> to vector<1xf32>
      %47 = vector.shape_cast %46 : vector<1xf32> to vector<1x1xf32>
      %c0_34 = arith.constant 0 : index
      %c0_35 = arith.constant 0 : index
      %48 = vector.load %arg5[%c0_34, %c0_35] : memref<1x1xf32, #tpu.memory_space<vmem>>, vector<1x1xf32>
      tpu.vector_store %arg5[%c0_34, %c0_35], %47 {strides = array<i32>} : memref<1x1xf32, #tpu.memory_space<vmem>>, vector<1x1xf32>,
    } else {
    }
    return
  }
  func.func @transform_0(%arg0: i32, %arg1: i32, %arg2: i32) -> (i32, i32) {
    %c1_i32 = arith.constant 1 : i32
    %0 = arith.muli %arg0, %c1_i32 : i32
    %1 = arith.addi %0, %arg1 : i32
    %c0_i32 = arith.constant 0 : i32
    %2 = arith.minsi %1, %c0_i32 : i32
    %c0_i32_0 = arith.constant 0 : i32
    return %2, %arg2 : i32, i32
  }
  func.func @transform_1(%arg0: i32, %arg1: i32, %arg2: i32) -> (i32, i32) {
    %c1_i32 = arith.constant 1 : i32
    %0 = arith.muli %arg0, %c1_i32 : i32
    %1 = arith.addi %0, %arg1 : i32
    %c0_i32 = arith.constant 0 : i32
    %2 = arith.minsi %1, %c0_i32 : i32
    %c0_i32_0 = arith.constant 0 : i32
    return %2, %arg2 : i32, i32
  }
  func.func @transform_2(%arg0: i32, %arg1: i32, %arg2: i32) -> (i32, i32) {
    %c0_i32 = arith.constant 0 : i32
    %c0_i32_0 = arith.constant 0 : i32
    return %arg0, %c0_i32 : i32, i32
  }
}

</mosaic_0001>

<llo_original>
// kernel: tpu_custom_call.1
$region0: #{tpu_custom_call.1}
  #allocation0 [shape = 'u32[]', space=smem, size = 0x4, offset = 0x4, fixed_abs, tag = 'smem constant byte address 0x4 - core index']
  #allocation1 [shape = 'u32[144,128]{1,0:T(1,128)}', space=vmem, size = 0x12000, scoped, tag = 'internal scratch']
  #allocation2 [shape = 'f32[16,1]{1,0:T(8,128)}', space=vmem, size = 0x2000, scoped, tag = 'scratch operand']
  #allocation3 [shape = 'f32[16,1]{1,0:T(8,128)}', space=vmem, size = 0x2000, scoped, tag = 'scratch operand']
  #allocation4 [shape = 'f32[16,1]{1,0:T(8,128)}', space=vmem, size = 0x2000, scoped, tag = 'scratch operand']
  #allocation5 [shape = 'f32[16,1]{1,0:T(8,128)}', space=vmem, size = 0x2000, scoped, tag = 'scratch operand']
  #allocation6 [shape = 'f32[16,1]{1,0:T(8,128)}', space=vmem, size = 0x2000, scoped, tag = 'scratch operand']
  %s0 = inlined_call_operand.hbm [shape: f32[16,32], index: 0, kind: input, shape index: {}]
  %s1 = inlined_call_operand.hbm [shape: f32[16,32], index: 1, kind: input, shape index: {}]
  %s2 = inlined_call_operand.hbm [shape: f32[1,1], index: 2, kind: output, shape index: {}]
  %s3 = sld [smem:[#allocation0]]
  $region42: #{tpu_custom_call.1} parent=0
    _
  %s5 = ssub.s32 1, %s3
  %s6 = scalar_select 0, %s5, %s3
  $region1: #{tpu_custom_call.1} parent=0
    #allocation7 [shape = 'u8[8192]{0}', space=vmem, size = 0x2000, scoped, tag = 'input window, operand 0, single buffered']
    #allocation8 [shape = 's32[1]{0}', space=sflag, size = 0x4, scoped, tag = 'scoped memory for tpu_custom_call.1']
    #allocation9 [shape = 's32[1]{0}', space=sflag, size = 0x4, scoped, tag = 'scoped memory for tpu_custom_call.1']
    #allocation10 [shape = 'u8[8192]{0}', space=vmem, size = 0x2000, scoped, tag = 'input window, operand 1, single buffered']
    #allocation11 [shape = 's32[1]{0}', space=sflag, size = 0x4, scoped, tag = 'scoped memory for tpu_custom_call.1']
    #allocation12 [shape = 'u8[512]{0}', space=vmem, size = 0x400, scoped, tag = 'output window, operand 0, single buffered']
    %7 = vsyncpa [#allocation8], 0
    %8 = vsyncpa [#allocation11], 0
    %9 = vsyncpa [#allocation9], 0
    // Predicated region
    $region2: #{tpu_custom_call.1} parent=1 // pred_check
      _
    $region3: #{tpu_custom_call.1} parent=1 // pred_check_branch
      %11 = sbr.rel (0) target = $region5
    $region4: #{tpu_custom_call.1} parent=1 // pred_region
      %s12 = sadd.s32 0, 0
      %p13 = scmp.lt.s32.totalorder %s12, 0
      %s14 = scalar_select %p13, %s12, 0
      %s15 = smul.u32 2, %s14
      %s17 = ssub.s32 256, 256
      %18 = vsyncadd [#allocation8], %s17
      %s19 = smul.addr %s15, 128
      %s20 = scalar_lea.hbm %s0, %s19
      %s21 = sshll.u32 [#allocation7], 4
      %s22 = int_to_ptr.vmem [resolvable:$true] %s21
      %27 = dma.hbm_to_vmem [thread:$0]  %s20, 256, %s22, [#allocation8], 128, 128, 8
    $region5: #{tpu_custom_call.1} parent=1 // pred_fallthru
      _
    // Predicated region
    $region6: #{tpu_custom_call.1} parent=1 // pred_check
      _
    $region7: #{tpu_custom_call.1} parent=1 // pred_check_branch
      %29 = sbr.rel (0) target = $region9
    $region8: #{tpu_custom_call.1} parent=1 // pred_region
      %s30 = sadd.s32 0, 0
      %p31 = scmp.lt.s32.totalorder %s30, 0
      %s32 = scalar_select %p31, %s30, 0
      %s33 = smul.u32 2, %s32
      %s35 = ssub.s32 256, 256
      %36 = vsyncadd [#allocation11], %s35
      %s37 = smul.addr %s33, 128
      %s38 = scalar_lea.hbm %s1, %s37
      %s39 = sshll.u32 [#allocation10], 4
      %s40 = int_to_ptr.vmem [resolvable:$true] %s39
      %45 = dma.hbm_to_vmem [thread:$0]  %s38, 256, %s40, [#allocation11], 128, 128, 8
    $region9: #{tpu_custom_call.1} parent=1 // pred_fallthru
      _
    // Predicated region
    $region10: #{tpu_custom_call.1} parent=1 // pred_check
      _
    $region11: #{tpu_custom_call.1} parent=1 // pred_check_branch
      %47 = sbr.rel (0) target = $region13
    $region12: #{tpu_custom_call.1} parent=1 // pred_region
      %48 = dma.done [#allocation8], 256
    $region13: #{tpu_custom_call.1} parent=1 // pred_fallthru
      _
    // Predicated region
    $region14: #{tpu_custom_call.1} parent=1 // pred_check
      _
    $region15: #{tpu_custom_call.1} parent=1 // pred_check_branch
      %50 = sbr.rel (0) target = $region17
    $region16: #{tpu_custom_call.1} parent=1 // pred_region
      %51 = dma.done [#allocation11], 256
    $region17: #{tpu_custom_call.1} parent=1 // pred_fallthru
      _
    %s52 = sadd.s32 0, 0
    %p53 = scmp.lt.s32.totalorder %s52, 0
    %s54 = scalar_select %p53, %s52, 0
    %s55 = smul.u32 2, %s54
    %s56 = sadd.s32 0, 0
    %p57 = scmp.lt.s32.totalorder %s56, 0
    %s58 = scalar_select %p57, %s56, 0
    %s59 = smul.u32 2, %s58
    %p60 = scmp.eq.s32.totalorder 0, 0
    %p61 = scmp.eq.s32.totalorder 0, 0
    %p62 = pnand %p60, %p61
    %p63 = pneg %p62
    // Predicated region
    $region18: #{tpu_custom_call.1} parent=1 // pred_check
      _
    $region19: #{tpu_custom_call.1} parent=1 // pred_check_branch
      %65 = sbr.rel (%p62) target = $region21
    $region20: #{tpu_custom_call.1} parent=1 // pred_region
      %vm66 = vcmask 7168
      %67 = vst.msk [vmem:[#allocation6] sm:$0xff] %vm66, 0.0
      %68 = vst.msk [vmem:[#allocation6 + $0x8] sm:$0xff] %vm66, 0.0
    $region21: #{tpu_custom_call.1} parent=1 // pred_fallthru
      _
    // Predicated region
    $region22: #{tpu_custom_call.1} parent=1 // pred_check
      %p69 = pneg %p61
    $region23: #{tpu_custom_call.1} parent=1 // pred_check_branch
      %71 = sbr.rel (%p69) target = $region25
    $region24: #{tpu_custom_call.1} parent=1 // pred_region
      %vm72 = vcmask 7168
      %73 = vst.msk [vmem:[#allocation2] sm:$0xff] %vm72, -inf
      %74 = vst.msk [vmem:[#allocation2 + $0x8] sm:$0xff] %vm72, -inf
      %75 = vst.msk [vmem:[#allocation3] sm:$0xff] %vm72, 0.0
      %76 = vst.msk [vmem:[#allocation3 + $0x8] sm:$0xff] %vm72, 0.0
      %77 = vst.msk [vmem:[#allocation4] sm:$0xff] %vm72, 0.0
      %78 = vst.msk [vmem:[#allocation4 + $0x8] sm:$0xff] %vm72, 0.0
      %79 = vst.msk [vmem:[#allocation5] sm:$0xff] %vm72, 0.0
      %80 = vst.msk [vmem:[#allocation5 + $0x8] sm:$0xff] %vm72, 0.0
    $region25: #{tpu_custom_call.1} parent=1 // pred_fallthru
      _
    %v81 = vld [vmem:[#allocation7] sm:$0xff]
    %v82 = vld [vmem:[#allocation7 + $0x8] sm:$0xff]
    %v83 = vld [vmem:[#allocation10] sm:$0xff]
    %v84 = vld [vmem:[#allocation10 + $0x8] sm:$0xff]
    %v85 = vmul.f32 %v83, %v81
    %v86 = vmul.f32 %v84, %v82
    %v87 = vld [vmem:[#allocation2] sm:$0xff]
    %v88 = vld [vmem:[#allocation2 + $0x8] sm:$0xff]
    %vm89 = vcmask 261120
    %v90 = vsel %vm89, %v81, -inf
    %91 = vmax.xlane.f32.xlu0 %v90
    %v92 = vpop.xlane.xlu0 %91
    %v93 = vsel %vm89, %v82, -inf
    %94 = vmax.xlane.f32.xlu0 %v93
    %v95 = vpop.xlane.xlu0 %94
    %v96 = vmax.f32 %v87, %v92
    %v97 = vmax.f32 %v88, %v95
    %v98 = vld [vmem:[#allocation3] sm:$0xff]
    %v99 = vld [vmem:[#allocation3 + $0x8] sm:$0xff]
    %v100 = vsub.f32 %v87, %v96
    %v101 = vsub.f32 %v88, %v97
    %v102 = vmul.f32 %v100, 1.442695
    %v103 = vpow.pop %v102
    %v104 = vmul.f32 %v101, 1.442695
    %v105 = vpow.pop %v104
    %v106 = vmul.f32 %v98, %v103
    %v107 = vmul.f32 %v99, %v105
    %109 = vset.pattern.permute.xlu0 0
    %110 = vperm.xlu0 %109, %v96
    %v111 = vpop.permute.xlu0 %110
    %114 = vset.pattern.permute.xlu0 0
    %115 = vperm.xlu0 %114, %v97
    %v116 = vpop.permute.xlu0 %115
    %v118 = vsub.f32 %v81, %v111
    %v119 = vsub.f32 %v82, %v116
    %v120 = vmul.f32 %v118, 1.442695
    %v121 = vpow.pop %v120
    %v122 = vmul.f32 %v119, 1.442695
    %v123 = vpow.pop %v122
    %v124 = vsel %vm89, %v121, 0.0
    %125 = vadd.xlane.f32.xlu0 %v124
    %v126 = vpop.xlane.xlu0 %125
    %v127 = vsel %vm89, %v123, 0.0
    %128 = vadd.xlane.f32.xlu0 %v127
    %v129 = vpop.xlane.xlu0 %128
    %v130 = vadd.f32 %v106, %v126
    %v131 = vadd.f32 %v107, %v129
    %vm132 = vcmask 7168
    %133 = vst.msk [vmem:[#allocation3] sm:$0xff] %vm132, %v130
    %134 = vst.msk [vmem:[#allocation3 + $0x8] sm:$0xff] %vm132, %v131
    %135 = vst.msk [vmem:[#allocation2] sm:$0xff] %vm132, %v96
    %136 = vst.msk [vmem:[#allocation2 + $0x8] sm:$0xff] %vm132, %v97
    %v137 = vld [vmem:[#allocation4] sm:$0xff]
    %v138 = vld [vmem:[#allocation4 + $0x8] sm:$0xff]
    %v139 = vsel %vm89, %v83, 0.0
    %140 = vadd.xlane.f32.xlu0 %v139
    %v141 = vpop.xlane.xlu0 %140
    %v142 = vsel %vm89, %v84, 0.0
    %143 = vadd.xlane.f32.xlu0 %v142
    %v144 = vpop.xlane.xlu0 %143
    %v145 = vadd.f32 %v137, %v141
    %v146 = vadd.f32 %v138, %v144
    %147 = vst.msk [vmem:[#allocation4] sm:$0xff] %vm132, %v145
    %148 = vst.msk [vmem:[#allocation4 + $0x8] sm:$0xff] %vm132, %v146
    %v149 = vld [vmem:[#allocation5] sm:$0xff]
    %v150 = vld [vmem:[#allocation5 + $0x8] sm:$0xff]
    %v151 = vsel %vm89, %v85, 0.0
    %152 = vadd.xlane.f32.xlu0 %v151
    %v153 = vpop.xlane.xlu0 %152
    %v154 = vsel %vm89, %v86, 0.0
    %155 = vadd.xlane.f32.xlu0 %v154
    %v156 = vpop.xlane.xlu0 %155
    %v157 = vadd.f32 %v149, %v153
    %v158 = vadd.f32 %v150, %v156
    %159 = vst.msk [vmem:[#allocation5] sm:$0xff] %vm132, %v157
    %160 = vst.msk [vmem:[#allocation5 + $0x8] sm:$0xff] %vm132, %v158
    // Predicated region
    $region26: #{tpu_custom_call.1} parent=1 // pred_check
      %p161 = pneg %p61
    $region27: #{tpu_custom_call.1} parent=1 // pred_check_branch
      %163 = sbr.rel (%p161) target = $region29
    $region28: #{tpu_custom_call.1} parent=1 // pred_region
      %v164 = vld [vmem:[#allocation2] sm:$0xff]
      %v165 = vld [vmem:[#allocation2 + $0x8] sm:$0xff]
      %v166 = vld [vmem:[#allocation3] sm:$0xff]
      %v167 = vld [vmem:[#allocation3 + $0x8] sm:$0xff]
      %v168 = vlog2.pop %v166
      %v169 = vmul.f32 %v168, 0.6931472
      %v170 = vlog2.pop %v167
      %v171 = vmul.f32 %v170, 0.6931472
      %v172 = vadd.f32 %v164, %v169
      %v173 = vadd.f32 %v165, %v171
      %v174 = vld [vmem:[#allocation4] sm:$0xff]
      %v175 = vld [vmem:[#allocation4 + $0x8] sm:$0xff]
      %v176 = vmul.f32 %v172, %v174
      %v177 = vmul.f32 %v173, %v175
      %v178 = vld [vmem:[#allocation5] sm:$0xff]
      %v179 = vld [vmem:[#allocation5 + $0x8] sm:$0xff]
      %v180 = vsub.f32 %v176, %v178
      %v181 = vsub.f32 %v177, %v179
      %s182 = sadd.s32 0, 0
      %s183 = smul.u32 %s182, 16
      %v184 = vlaneseq
      %v185 = vshrl.u32 %v184, 7
      %v186 = vadd.s32 %v185, 8
      %v187 = vstv %s183
      %v188 = vadd.s32 %v187, %v185
      %v189 = vadd.s32 %v187, %v186
      %v190 = vld [vmem:[#allocation6] sm:$0xff]
      %v191 = vld [vmem:[#allocation6 + $0x8] sm:$0xff]
      %vm192 = vcmp.lt.s32.totalorder %v188, 16
      %vm193 = vcmp.lt.s32.totalorder %v189, 16
      %v194 = vsel %vm192, %v180, 0.0
      %v195 = vsel %vm193, %v181, 0.0
      %v196 = vadd.f32 %v190, %v194
      %v197 = vadd.f32 %v191, %v195
      %198 = vst.msk [vmem:[#allocation6] sm:$0xff] %vm132, %v196
      %199 = vst.msk [vmem:[#allocation6 + $0x8] sm:$0xff] %vm132, %v197
    $region29: #{tpu_custom_call.1} parent=1 // pred_fallthru
      _
    // Predicated region
    $region30: #{tpu_custom_call.1} parent=1 // pred_check
      _
    $region31: #{tpu_custom_call.1} parent=1 // pred_check_branch
      %201 = sbr.rel (%p62) target = $region33
    $region32: #{tpu_custom_call.1} parent=1 // pred_region
      %v202 = vld [vmem:[#allocation6] sm:$0xff]
      %v203 = vld [vmem:[#allocation6 + $0x8] sm:$0xff]
      %v204 = vsel %vm132, %v202, 0.0
      %v205 = vsel %vm132, %v203, 0.0
      %v206 = vadd.f32 %v204, %v205
      %v207 = vrot.slane %v206, 4
      %v208 = vadd.f32 %v206, %v207
      %v209 = vrot.slane %v208, 2
      %v210 = vadd.f32 %v208, %v209
      %v211 = vrot.slane %v210, 1
      %v212 = vadd.f32 %v210, %v211
      %vm213 = vcmask 0
      %214 = vst.msk [vmem:[#allocation12] sm:$0x1] %vm213, %v212
    $region33: #{tpu_custom_call.1} parent=1 // pred_fallthru
      _
    // Predicated region
    $region34: #{tpu_custom_call.1} parent=1 // pred_check
      _
    $region35: #{tpu_custom_call.1} parent=1 // pred_check_branch
      %216 = sbr.rel (0) target = $region37
    $region36: #{tpu_custom_call.1} parent=1 // pred_region
      %s218 = ssub.s32 16, 16
      %219 = vsyncadd [#allocation9], %s218
      %s221 = sshll.u32 [#allocation12], 4
      %s222 = int_to_ptr.vmem [resolvable:$true] %s221
      %224 = dma.vmem_to_hbm [thread:$0]  %s222, 16, %s2, [#allocation9]
    $region37: #{tpu_custom_call.1} parent=1 // pred_fallthru
      _
    // Predicated region
    $region38: #{tpu_custom_call.1} parent=1 // pred_check
      _
    $region39: #{tpu_custom_call.1} parent=1 // pred_check_branch
      %226 = sbr.rel (0) target = $region41
    $region40: #{tpu_custom_call.1} parent=1 // pred_region
      %227 = dma.done [#allocation9], 16
    $region41: #{tpu_custom_call.1} parent=1 // pred_fallthru
      _
    %228 = vsyncpa [#allocation8], 1
    %229 = vsyncpa [#allocation11], 1
    %230 = vsyncpa [#allocation9], 1

</llo_original>
